<compile_context>
chip_gen: v6e
topology: v6e:2x2x1
jax: 0.10.0
libtpu: 0.0.40
codegen_flags: <defaults>
</compile_context>

<pallas_src>
import functools

import jax
import jax.numpy as jnp
import numpy as np
from jax.experimental import pallas as pl
from jax.experimental.pallas import tpu as pltpu

NEG_SLOPE = 0.01  # nn.LeakyReLU default


def _round_up(x, m):
    return (x + m - 1) // m * m


def gnn_layer_kernel(msgs_ref, w_ref, b_ref, out_ref, *, use_bias, use_act):
    """One tile of packed node rows.

    msgs_ref : [TR, pack*kf]        distance-scaled neighbor feats, lane-packed
    w_ref    : [pack*kf, out_pad]   block-diagonal weight (resident)
    b_ref    : [1, out_pad]         bias tiled `pack` times (resident)
    out_ref  : [TR, out_pad]        pack*out_feats packed per row
    """
    acc = jnp.dot(msgs_ref[...], w_ref[...],
                  preferred_element_type=jnp.float32)          # MXU, f32 acc
    if use_bias:
        acc = acc + b_ref[...].astype(jnp.float32)
    if use_act:
        acc = jnp.where(acc >= 0.0, acc, NEG_SLOPE * acc)      # LeakyReLU
    out_ref[...] = acc.astype(out_ref.dtype)


def gnn_layer(h, pos, nbr_idx, weight, bias_arr, *,
              neighbor, in_feats, out_feats, use_bias, use_act,
              tile_n=2048, compute_dtype=jnp.float32):
    """DGL-style update_all for a graph with fixed in-degree == neighbor.

    h: [N, in_feats], pos: [N, pos_dim], nbr_idx: [N, neighbor] (int),
    weight: [neighbor*in_feats, out_feats], bias_arr: [1, out_feats].
    """
    n = h.shape[0]
    kf = neighbor * in_feats

    # ---- DGL mailbox gather + distance + 1/dist scaling (plain-JAX glue;
    # fuses into the gather fusion, so no extra HBM pass) --------------------
    msgs = h[nbr_idx]                                   # [N, K, F]
    src_pos = pos[nbr_idx]                              # [N, K, P]
    diff = pos[:, None, :] - src_pos                    # [N, K, P]
    sumsq = jnp.sum(diff * diff, axis=2)                # [N, K]
    # 1/dist via rsqrt on the squared norm; dist==0 -> 0.5  =>  inv_dist = 2.0
    inv_dist = jnp.where(sumsq > 0, jax.lax.rsqrt(sumsq), jnp.float32(2.0))
    msgs_flat = (msgs * inv_dist[:, :, None]).reshape(n, kf)   # [N, K*F]

    # ---- lane packing: `pack` nodes per 128-lane row ------------------------
    pack = 128 // kf if (kf <= 128 and 128 % kf == 0) else 1
    kf_packed = pack * kf                               # == 128 when packed
    out_block = pack * out_feats
    out_block_pad = _round_up(out_block, 128)

    # Block-diagonal weight kron(I_pack, W) and tiled bias -> one fused matmul
    # per packed row.
    w_block = jnp.kron(jnp.eye(pack, dtype=weight.dtype), weight)
    w_block = jnp.pad(w_block, ((0, 0), (0, out_block_pad - out_block)))
    b = bias_arr if use_bias else jnp.zeros((1, out_feats), jnp.float32)
    b_block = jnp.pad(jnp.tile(b, (1, pack)),
                      ((0, 0), (0, out_block_pad - out_block)))

    # ---- tile sizing over packed rows ---------------------------------------
    n_grp = pl.cdiv(n, pack)
    tile_rows_max = max(8, _round_up(max(tile_n // pack, 1), 8))
    # keep >= 4 grid steps so the parallel axis can shard across v7x's 2 TCs
    tile_rows = min(tile_rows_max, max(8, _round_up(pl.cdiv(n_grp, 4), 8)))
    n_grp_pad = _round_up(n_grp, tile_rows)
    n_pad = n_grp_pad * pack

    msgs_p = jnp.pad(msgs_flat, ((0, n_pad - n), (0, 0))).reshape(
        n_grp_pad, kf_packed)

    if compute_dtype != jnp.float32:
        msgs_p = msgs_p.astype(compute_dtype)
        w_block = w_block.astype(compute_dtype)
        b_block = b_block.astype(compute_dtype)

    # ---- VMEM budget computed from the real (double-buffered) tile sizes ----
    in_bytes = jnp.dtype(compute_dtype).itemsize
    vmem_bytes = (2 * tile_rows * kf_packed * in_bytes        # msgs (2 bufs)
                  + 2 * tile_rows * out_block_pad * 4         # out  (2 bufs, f32)
                  + kf_packed * out_block_pad * in_bytes      # W resident
                  + out_block_pad * in_bytes)                 # bias resident
    vmem_limit = int(min(max(2 * vmem_bytes, 4 * 1024 * 1024),
                         32 * 1024 * 1024))

    kernel = functools.partial(gnn_layer_kernel,
                               use_bias=use_bias, use_act=use_act)
    out_p = pl.pallas_call(
        kernel,
        out_shape=jax.ShapeDtypeStruct((n_grp_pad, out_block_pad), jnp.float32),
        grid_spec=pltpu.PrefetchScalarGridSpec(
            num_scalar_prefetch=0,
            grid=(n_grp_pad // tile_rows,),
            in_specs=[
                pl.BlockSpec((tile_rows, kf_packed), lambda i: (i, 0)),    # msgs
                pl.BlockSpec((kf_packed, out_block_pad), lambda i: (0, 0)),  # W
                pl.BlockSpec((1, out_block_pad), lambda i: (0, 0)),          # bias
            ],
            out_specs=pl.BlockSpec((tile_rows, out_block_pad),
                                   lambda i: (i, 0)),
        ),
        compiler_params=pltpu.CompilerParams(
            dimension_semantics=("parallel",),          # megacore-shardable
            vmem_limit_bytes=vmem_limit),
    )(msgs_p, w_block, b_block)

    # Unpack: row g holds nodes [g*pack : (g+1)*pack], each out_feats wide.
    out = out_p[:, :out_block].reshape(n_pad, out_feats)
    return out[:n]


def _xavier_uniform(key, shape, gain=1.0):
    fan_in, fan_out = shape[0], shape[1]
    bound = gain * np.sqrt(6.0 / (fan_in + fan_out))
    return jax.random.uniform(key, shape, jnp.float32, -bound, bound)


def _reference(pos, nbr_idx, h, weight, bias_arr, neighbor, in_feats,
               out_feats, use_bias, use_act):
    msgs = h[nbr_idx]                                   # [N, K, F]
    src_pos = pos[nbr_idx]                              # [N, K, P]
    tmp = pos[:, None, :] - src_pos                     # [N, K, P]
    dist = jnp.linalg.norm(tmp, axis=2, keepdims=True)  # [N, K, 1]
    dist = jnp.where(dist == 0.0, 0.5, dist)
    wow = (msgs / dist).reshape(-1, neighbor * in_feats)
    h1 = wow @ weight
    if use_bias:
        h1 = h1 + bias_arr
    if use_act:
        h1 = jnp.where(h1 >= 0.0, h1, NEG_SLOPE * h1)
    return h1


if __name__ == "__main__":
    # Small synthetic graph with fixed in-degree == neighbor.
    # N=500 is NOT a multiple of the packed tile -> exercises padded last tile.
    N, NEIGHBOR, IN_FEATS, OUT_FEATS, POS_DIM = 500, 4, 8, 32, 3
    USE_BIAS, USE_ACT = True, True

    key = jax.random.PRNGKey(0)
    k_h, k_pos, k_w, k_b = jax.random.split(key, 4)

    h = jax.random.normal(k_h, (N, IN_FEATS), jnp.float32)        # node feats
    pos = jax.random.normal(k_pos, (N, POS_DIM), jnp.float32)     # positions

    # Deterministic parameter init (xavier_uniform, relu gain as in the module).
    gain = float(np.sqrt(2.0))  # calculate_gain('relu')
    weight = _xavier_uniform(k_w, (NEIGHBOR * IN_FEATS, OUT_FEATS), gain)
    bias_arr = _xavier_uniform(k_b, (1, OUT_FEATS), gain)

    # Deterministic neighbor lists: node i's k-th neighbor is (i + k + 1) % N.
    nbr_idx = (jnp.arange(N)[:, None] + jnp.arange(1, NEIGHBOR + 1)[None, :]) % N

    # TODO(synk): the DGL branch for nodes whose in-degree != neighbor (h1 = 0)
    # is not exercised here since the synthetic graph has fixed in-degree; a
    # real graph would need a per-node degree mask applied to the output.

    # f32 path (strict tolerance).
    out = gnn_layer(h, pos, nbr_idx, weight, bias_arr,
                    neighbor=NEIGHBOR, in_feats=IN_FEATS, out_feats=OUT_FEATS,
                    use_bias=USE_BIAS, use_act=USE_ACT, tile_n=2048)
    out = jax.block_until_ready(out)

    ref = _reference(pos, nbr_idx, h, weight, bias_arr, NEIGHBOR, IN_FEATS,
                     OUT_FEATS, USE_BIAS, USE_ACT)
    np.testing.assert_allclose(np.asarray(out), np.asarray(ref),
                               rtol=1e-5, atol=2e-5)

    # Optional reduced-precision path (bf16 inputs, f32 MXU accumulate),
    # gated behind the flag and checked with loose tolerance.
    out_bf16 = gnn_layer(h, pos, nbr_idx, weight, bias_arr,
                         neighbor=NEIGHBOR, in_feats=IN_FEATS,
                         out_feats=OUT_FEATS, use_bias=USE_BIAS,
                         use_act=USE_ACT, tile_n=2048,
                         compute_dtype=jnp.bfloat16)
    out_bf16 = jax.block_until_ready(out_bf16)
    np.testing.assert_allclose(np.asarray(out_bf16), np.asarray(ref),
                               rtol=3e-2, atol=3e-2)

    print("KERNEL_OK")
</pallas_src>

<mosaic_0001>
module attributes {stable_mosaic.version = 11 : i64} {
  func.func @gnn_layer_kernel(%arg0: i32, %arg1: memref<32x128xf32, #tpu.memory_space<vmem>>, %arg2: memref<128x128xf32, #tpu.memory_space<vmem>>, %arg3: memref<1x128xf32, #tpu.memory_space<vmem>>, %arg4: memref<32x128xf32, #tpu.memory_space<vmem>>) attributes {dimension_semantics = [#tpu.dimension_semantics<parallel>], iteration_bounds = array<i64: 4>, scalar_prefetch = 0 : i64, scratch_operands = 0 : i64, tpu.core_type = #tpu.core_type<tc>, window_params = [{transform_indices = @transform_0, window_bounds = array<i64: 32, 128>}, {pipeline_mode = #tpu.pipeline_mode<synchronous>, transform_indices = @transform_1, window_bounds = array<i64: 128, 128>}, {pipeline_mode = #tpu.pipeline_mode<synchronous>, transform_indices = @transform_2, window_bounds = array<i64: 1, 128>}, {transform_indices = @transform_3, window_bounds = array<i64: 32, 128>}]} {
    %c0 = arith.constant 0 : index
    %c0_0 = arith.constant 0 : index
    %0 = vector.load %arg1[%c0, %c0_0] : memref<32x128xf32, #tpu.memory_space<vmem>>, vector<32x128xf32>
    %c0_1 = arith.constant 0 : index
    %c0_2 = arith.constant 0 : index
    %1 = vector.load %arg2[%c0_1, %c0_2] : memref<128x128xf32, #tpu.memory_space<vmem>>, vector<128x128xf32>
    %cst = arith.constant dense<0.000000e+00> : vector<32x128xf32>
    %2 = tpu.matmul %0, %1, %cst {dimension_numbers = #tpu.dot_dimension_numbers<[1], [0], [0], [1], [0, 0, 1, 1], [], []>} : vector<32x128xf32>, vector<128x128xf32>, vector<32x128xf32> -> vector<32x128xf32>
    %c0_3 = arith.constant 0 : index
    %c0_4 = arith.constant 0 : index
    %3 = vector.load %arg3[%c0_3, %c0_4] : memref<1x128xf32, #tpu.memory_space<vmem>>, vector<1x128xf32>
    %4 = vector.broadcast %3 : vector<1x128xf32> to vector<32x128xf32>
    %5 = arith.addf %2, %4 : vector<32x128xf32>
    %cst_5 = arith.constant 0.000000e+00 : f32
    %6 = vector.broadcast %cst_5 : f32 to vector<32x128xf32>
    %7 = arith.cmpf oge, %5, %6 : vector<32x128xf32>
    %cst_6 = arith.constant 0.00999999977 : f32
    %8 = vector.broadcast %cst_6 : f32 to vector<32x128xf32>
    %9 = arith.mulf %8, %5 : vector<32x128xf32>
    %10 = arith.select %7, %5, %9 : vector<32x128xi1>, vector<32x128xf32>
    %c0_7 = arith.constant 0 : index
    %c0_8 = arith.constant 0 : index
    %11 = vector.load %arg4[%c0_7, %c0_8] : memref<32x128xf32, #tpu.memory_space<vmem>>, vector<32x128xf32>
    tpu.vector_store %arg4[%c0_7, %c0_8], %10 {strides = array<i32>} : memref<32x128xf32, #tpu.memory_space<vmem>>, vector<32x128xf32>,
    return
  }
  func.func @transform_0(%arg0: i32) -> (i32, i32) {
    %c0_i32 = arith.constant 0 : i32
    %c0_i32_0 = arith.constant 0 : i32
    return %arg0, %c0_i32 : i32, i32
  }
  func.func @transform_1(%arg0: i32) -> (i32, i32) {
    %c0_i32 = arith.constant 0 : i32
    %c0_i32_0 = arith.constant 0 : i32
    %c0_i32_1 = arith.constant 0 : i32
    return %c0_i32, %c0_i32_0 : i32, i32
  }
  func.func @transform_2(%arg0: i32) -> (i32, i32) {
    %c0_i32 = arith.constant 0 : i32
    %c0_i32_0 = arith.constant 0 : i32
    %c0_i32_1 = arith.constant 0 : i32
    return %c0_i32, %c0_i32_0 : i32, i32
  }
  func.func @transform_3(%arg0: i32) -> (i32, i32) {
    %c0_i32 = arith.constant 0 : i32
    %c0_i32_0 = arith.constant 0 : i32
    return %arg0, %c0_i32 : i32, i32
  }
}

</mosaic_0001>

<llo_original>
// kernel: tpu_custom_call.1
$region0: #{tpu_custom_call.1}
  #allocation0 [shape = 'u32[]', space=smem, size = 0x4, offset = 0x4, fixed_abs, tag = 'smem constant byte address 0x4 - core index']
  #allocation1 [shape = 'u32[144,128]{1,0:T(1,128)}', space=vmem, size = 0x12000, scoped, tag = 'internal scratch']
  %s0 = inlined_call_operand.hbm [shape: f32[128,128], index: 0, kind: input, shape index: {}]
  %s1 = inlined_call_operand.hbm [shape: f32[128,128], index: 1, kind: input, shape index: {}]
  %s2 = inlined_call_operand.vmem [shape: f32[1,128], index: 2, kind: input, shape index: {}]
  %s3 = inlined_call_operand.hbm [shape: f32[128,128], index: 3, kind: output, shape index: {}]
  %s4 = sld [smem:[#allocation0]]
  $region53: #{tpu_custom_call.1} parent=0
    _
  %s6 = ssub.s32 1, %s4
  %s7 = scalar_select 0, %s6, %s4
  $region1: #{tpu_custom_call.1} parent=0
    #allocation2 [shape = 'u8[32768]{0}', space=vmem, size = 0x8000, scoped, tag = 'input window, operand 0']
    #allocation3 [shape = 's32[2]{0}', space=sflag, size = 0x8, scoped, tag = 'scoped memory for tpu_custom_call.1']
    #allocation4 [shape = 's32[2]{0}', space=sflag, size = 0x8, scoped, tag = 'scoped memory for tpu_custom_call.1']
    #allocation5 [shape = 'u8[65536]{0}', space=vmem, size = 0x10000, scoped, tag = 'input window, operand 1, single buffered']
    #allocation6 [shape = 's32[1]{0}', space=sflag, size = 0x4, scoped, tag = 'scoped memory for tpu_custom_call.1']
    #allocation7 [shape = 'u8[32768]{0}', space=vmem, size = 0x8000, scoped, tag = 'output window, operand 0']
    %8 = vsyncpa [#allocation3], 0
    %s9 = scalar_lea.sflag [#allocation3], 1
    %10 = vsyncpa %s9, 0
    %11 = vsyncpa [#allocation6], 0
    %12 = vsyncpa [#allocation4], 0
    %s13 = scalar_lea.sflag [#allocation4], 1
    %14 = vsyncpa %s13, 0
    loop: start=0, step=1, limit=6
    $region2: #{tpu_custom_call.1} parent=1 // loop_pre_header
      _
    $region3: #{tpu_custom_call.1} parent=1 // loop_header
      %s16 = sphi 0, %s20
      %p17 = scmp.ge.s32.totalorder %s16, 6
      %s26 = sphi 0, %s28
      %s29 = sphi 0, %s26
      %s30 = sphi 0, %s29
      %s46 = sphi 0, %s30
      %s50 = sphi 0, %s50
      %s52 = sphi 0, %s50
      %s53 = sphi 0, %s52
      %s67 = sphi 0, %s53
      %s71 = sphi 0, %s71
      %s73 = sphi 0, %s71
      %s74 = sphi 0, %s73
      %s88 = sphi 0, %s74
      %s94 = sphi 0, %s96
      %s97 = sphi 0, %s94
      %s98 = sphi 0, %s97
      %s114 = sphi 0, %s98
    $region4: #{tpu_custom_call.1} parent=1 // loop_header_branch
      %19 = sbr.rel (%p17) target = $region8
    $region5: #{tpu_custom_call.1} parent=1 // loop_body
      %s21 = ssub.s32 %s16, 1
      %s22 = ssub.s32 %s16, 2
      %s23 = sadd.s32 %s16, 1
      %s24 = ssub.s32 %s16, %s23
      %p25 = scmp.eq.s32.totalorder %s24, 0
      %s27 = sadd.s32 %s26, 1
      %s28 = scalar_select %p25, %s26, %s27
      %p31 = pneg %p25
      %p32 = scmp.eq.s32.totalorder %s16, 3
      %p33 = por %p31, %p32
      %p34 = scmp.ne.s32.totalorder %s26, %s29
      %p35 = scmp.eq.s32.totalorder %s16, 0
      %p36 = por %p34, %p35
      %p37 = scmp.ne.s32.totalorder %s26, %s29
      %p38 = scmp.eq.s32.totalorder %s21, 3
      %p39 = por %p37, %p38
      %p40 = scmp.ne.s32.totalorder %s29, %s30
      %p41 = scmp.eq.s32.totalorder %s21, 0
      %p42 = por %p40, %p41
      %p43 = scmp.ne.s32.totalorder %s29, %s30
      %p44 = scmp.eq.s32.totalorder %s22, 3
      %p45 = por %p43, %p44
      %p47 = scmp.ne.s32.totalorder %s30, %s46
      %p48 = scmp.eq.s32.totalorder %s22, 0
      %p49 = por %p47, %p48
      %s51 = sadd.s32 %s50, 1
      %p54 = scmp.eq.s32.totalorder %s16, 3
      %p55 = scmp.ne.s32.totalorder %s50, %s52
      %p56 = scmp.eq.s32.totalorder %s16, 0
      %p57 = por %p55, %p56
      %p58 = scmp.ne.s32.totalorder %s50, %s52
      %p59 = scmp.eq.s32.totalorder %s21, 3
      %p60 = por %p58, %p59
      %p61 = scmp.ne.s32.totalorder %s52, %s53
      %p62 = scmp.eq.s32.totalorder %s21, 0
      %p63 = por %p61, %p62
      %p64 = scmp.ne.s32.totalorder %s52, %s53
      %p65 = scmp.eq.s32.totalorder %s22, 3
      %p66 = por %p64, %p65
      %p68 = scmp.ne.s32.totalorder %s53, %s67
      %p69 = scmp.eq.s32.totalorder %s22, 0
      %p70 = por %p68, %p69
      %s72 = sadd.s32 %s71, 1
      %p75 = scmp.eq.s32.totalorder %s16, 3
      %p76 = scmp.ne.s32.totalorder %s71, %s73
      %p77 = scmp.eq.s32.totalorder %s16, 0
      %p78 = por %p76, %p77
      %p79 = scmp.ne.s32.totalorder %s71, %s73
      %p80 = scmp.eq.s32.totalorder %s21, 3
      %p81 = por %p79, %p80
      %p82 = scmp.ne.s32.totalorder %s73, %s74
      %p83 = scmp.eq.s32.totalorder %s21, 0
      %p84 = por %p82, %p83
      %p85 = scmp.ne.s32.totalorder %s73, %s74
      %p86 = scmp.eq.s32.totalorder %s22, 3
      %p87 = por %p85, %p86
      %p89 = scmp.ne.s32.totalorder %s74, %s88
      %p90 = scmp.eq.s32.totalorder %s22, 0
      %p91 = por %p89, %p90
      %s92 = ssub.s32 %s16, %s23
      %p93 = scmp.eq.s32.totalorder %s92, 0
      %s95 = sadd.s32 %s94, 1
      %s96 = scalar_select %p93, %s94, %s95
      %p99 = pneg %p93
      %p100 = scmp.eq.s32.totalorder %s16, 3
      %p101 = por %p99, %p100
      %p102 = scmp.ne.s32.totalorder %s94, %s97
      %p103 = scmp.eq.s32.totalorder %s16, 0
      %p104 = por %p102, %p103
      %p105 = scmp.ne.s32.totalorder %s94, %s97
      %p106 = scmp.eq.s32.totalorder %s21, 3
      %p107 = por %p105, %p106
      %p108 = scmp.ne.s32.totalorder %s97, %s98
      %p109 = scmp.eq.s32.totalorder %s21, 0
      %p110 = por %p108, %p109
      %p111 = scmp.ne.s32.totalorder %s97, %s98
      %p112 = scmp.eq.s32.totalorder %s22, 3
      %p113 = por %p111, %p112
      %p115 = scmp.ne.s32.totalorder %s98, %s114
      %p116 = scmp.eq.s32.totalorder %s22, 0
      %p117 = por %p115, %p116
      %p118 = scmp.le.s32.totalorder 1, %s16
      %p119 = scmp.lt.s32.totalorder %s16, 5
      %p120 = pnand %p118, %p119
      %p121 = pneg %p120
      // Predicated region
      $region9: #{tpu_custom_call.1} parent=5 // pred_check
        _
      $region10: #{tpu_custom_call.1} parent=5 // pred_check_branch
        %123 = sbr.rel (%p120) target = $region12
      $region11: #{tpu_custom_call.1} parent=5 // pred_region
        %s124 = ssub.s32 %s16, 1
        // Predicated region
        $region13: #{tpu_custom_call.1} parent=11 // pred_check
          %p125 = pneg %p63
        $region14: #{tpu_custom_call.1} parent=11 // pred_check_branch
          %127 = sbr.rel (%p125) target = $region16
        $region15: #{tpu_custom_call.1} parent=11 // pred_region
          %s129 = ssub.s32 2048, 2048
          %130 = vsyncadd [#allocation6], %s129
          %s131 = sshll.u32 [#allocation5], 4
          %s132 = int_to_ptr.vmem [resolvable:$true] %s131
          %137 = dma.hbm_to_vmem [thread:$0]  %s1, 2048, %s132, [#allocation6], 128, 128, 8
        $region16: #{tpu_custom_call.1} parent=11 // pred_fallthru
          _
        // Predicated region
        $region17: #{tpu_custom_call.1} parent=11 // pred_check
          %p138 = pneg %p84
        $region18: #{tpu_custom_call.1} parent=11 // pred_check_branch
          %140 = sbr.rel (%p138) target = $region20
        $region19: #{tpu_custom_call.1} parent=11 // pred_region
          _
        $region20: #{tpu_custom_call.1} parent=11 // pred_fallthru
          _
      $region12: #{tpu_custom_call.1} parent=5 // pred_fallthru
        _
      %p141 = scmp.lt.s32.totalorder %s16, 4
      // Predicated region
      $region21: #{tpu_custom_call.1} parent=5 // pred_check
        %p142 = pneg %p141
      $region22: #{tpu_custom_call.1} parent=5 // pred_check_branch
        %144 = sbr.rel (%p142) target = $region24
      $region23: #{tpu_custom_call.1} parent=5 // pred_region
        // Predicated region
        $region25: #{tpu_custom_call.1} parent=23 // pred_check
          %p145 = pneg %p36
        $region26: #{tpu_custom_call.1} parent=23 // pred_check_branch
          %147 = sbr.rel (%p145) target = $region28
        $region27: #{tpu_custom_call.1} parent=23 // pred_region
          %s148 = sand.u32 %s26, 1
          %s149 = scalar_lea.sflag [#allocation3], %s148
          %s150 = sand.u32 %s26, 1
          %s151 = smul.addr %s150, 32
          %s152 = scalar_lea.vmem [#allocation2], %s151
          %s153 = smul.u32 4, %s16
          %s155 = ssub.s32 512, 512
          %156 = vsyncadd %s149, %s155
          %s157 = smul.addr %s153, 128
          %s158 = scalar_lea.hbm %s0, %s157
          %s159 = sshll.u32 %s152, 4
          %s160 = int_to_ptr.vmem [resolvable:$true] %s159
          %165 = dma.hbm_to_vmem [thread:$0]  %s158, 512, %s160, %s149, 128, 128, 8
        $region28: #{tpu_custom_call.1} parent=23 // pred_fallthru
          _
      $region24: #{tpu_custom_call.1} parent=5 // pred_fallthru
        _
      %p166 = scmp.le.s32.totalorder 1, %s16
      %p167 = scmp.lt.s32.totalorder %s16, 5
      %p168 = pnand %p166, %p167
      %p169 = pneg %p168
      // Predicated region
      $region29: #{tpu_custom_call.1} parent=5 // pred_check
        _
      $region30: #{tpu_custom_call.1} parent=5 // pred_check_branch
        %171 = sbr.rel (%p168) target = $region32
      $region31: #{tpu_custom_call.1} parent=5 // pred_region
        %s172 = ssub.s32 %s16, 1
        %s173 = sand.u32 %s29, 1
        %s174 = scalar_lea.sflag [#allocation3], %s173
        %s175 = sand.u32 %s29, 1
        %s176 = smul.addr %s175, 32
        %s177 = scalar_lea.vmem [#allocation2], %s176
        // Predicated region
        $region33: #{tpu_custom_call.1} parent=31 // pred_check
          %p178 = pneg %p42
        $region34: #{tpu_custom_call.1} parent=31 // pred_check_branch
          %180 = sbr.rel (%p178) target = $region36
        $region35: #{tpu_custom_call.1} parent=31 // pred_region
          %181 = dma.done %s174, 512
        $region36: #{tpu_custom_call.1} parent=31 // pred_fallthru
          _
        // Predicated region
        $region37: #{tpu_custom_call.1} parent=31 // pred_check
          %p182 = pneg %p63
        $region38: #{tpu_custom_call.1} parent=31 // pred_check_branch
          %184 = sbr.rel (%p182) target = $region40
        $region39: #{tpu_custom_call.1} parent=31 // pred_region
          %185 = dma.done [#allocation6], 2048
        $region40: #{tpu_custom_call.1} parent=31 // pred_fallthru
          _
        %s186 = sand.u32 %s29, 1
        %s187 = scalar_lea.sflag [#allocation3], %s186
        %s188 = sand.u32 %s29, 1
        %s189 = smul.addr %s188, 32
        %s190 = scalar_lea.vmem [#allocation2], %s189
        %p191 = pneg %p42
        %p192 = pneg %p39
        %p193 = pneg %p63
        %p194 = pneg %p60
        %p195 = pneg %p84
        %p196 = pneg %p81
        %p197 = pneg %p110
        %p198 = pneg %p107
        %s199 = sand.u32 %s97, 1
        %s200 = scalar_lea.sflag [#allocation4], %s199
        %s201 = sand.u32 %s97, 1
        %s202 = smul.addr %s201, 32
        %s203 = scalar_lea.vmem [#allocation7], %s202
        %s204 = smul.u32 4, %s21
        %s205 = smul.u32 4, %s21
        %v206 = vld [vmem:[%s177] sm:$0xff]
        %v207 = vld [vmem:[%s177 + $0x8] sm:$0xff]
        %v208 = vld [vmem:[%s177 + $0x10] sm:$0xff]
        %v209 = vld [vmem:[%s177 + $0x18] sm:$0xff]
        %v210 = vld [vmem:[#allocation5] sm:$0xff]
        %v211 = vld [vmem:[#allocation5 + $0x8] sm:$0xff]
        %v212 = vld [vmem:[#allocation5 + $0x10] sm:$0xff]
        %v213 = vld [vmem:[#allocation5 + $0x18] sm:$0xff]
        %v214 = vld [vmem:[#allocation5 + $0x20] sm:$0xff]
        %v215 = vld [vmem:[#allocation5 + $0x28] sm:$0xff]
        %v216 = vld [vmem:[#allocation5 + $0x30] sm:$0xff]
        %v217 = vld [vmem:[#allocation5 + $0x38] sm:$0xff]
        %v218 = vld [vmem:[#allocation5 + $0x40] sm:$0xff]
        %v219 = vld [vmem:[#allocation5 + $0x48] sm:$0xff]
        %v220 = vld [vmem:[#allocation5 + $0x50] sm:$0xff]
        %v221 = vld [vmem:[#allocation5 + $0x58] sm:$0xff]
        %v222 = vld [vmem:[#allocation5 + $0x60] sm:$0xff]
        %v223 = vld [vmem:[#allocation5 + $0x68] sm:$0xff]
        %v224 = vld [vmem:[#allocation5 + $0x70] sm:$0xff]
        %v225 = vld [vmem:[#allocation5 + $0x78] sm:$0xff]
        %v226 = vld [vmem:[%s2] sm:$0x1]
        %v228 = vlaneseq
        %v229 = vshrl.u32 %v228, 7
        %v230 = vsub.s32 0, %v229
        %v231 = vrot.slane %v226, %v230
        %233 = vmatprep.subr.mxu0 0.0
        %234 = vmatpush1.msra.mxu0 %v225
        %235 = vmatprep.subr.mxu0 0.0
        %236 = vmatpush1.msra.mxu0 %v224
        %237 = vmatprep.subr.mxu0 0.0
        %238 = vmatpush1.msra.mxu0 %v223
        %239 = vmatprep.subr.mxu0 0.0
        %240 = vmatpush1.msra.mxu0 %v222
        %241 = vmatprep.subr.mxu0 0.0
        %242 = vmatpush1.msra.mxu0 %v221
        %243 = vmatprep.subr.mxu0 0.0
        %244 = vmatpush1.msra.mxu0 %v220
        %245 = vmatprep.subr.mxu0 0.0
        %246 = vmatpush1.msra.mxu0 %v219
        %247 = vmatprep.subr.mxu0 0.0
        %248 = vmatpush1.msra.mxu0 %v218
        %249 = vmatprep.subr.mxu0 0.0
        %250 = vmatpush1.msra.mxu0 %v217
        %251 = vmatprep.subr.mxu0 0.0
        %252 = vmatpush1.msra.mxu0 %v216
        %253 = vmatprep.subr.mxu0 0.0
        %254 = vmatpush1.msra.mxu0 %v215
        %255 = vmatprep.subr.mxu0 0.0
        %256 = vmatpush1.msra.mxu0 %v214
        %257 = vmatprep.subr.mxu0 0.0
        %258 = vmatpush1.msra.mxu0 %v213
        %259 = vmatprep.subr.mxu0 0.0
        %260 = vmatpush1.msra.mxu0 %v212
        %261 = vmatprep.subr.mxu0 0.0
        %262 = vmatpush1.msra.mxu0 %v211
        %263 = vmatprep.subr.mxu0 0.0
        %264 = vmatpush1.msra.mxu0 %v210
        %265 = vmatprep.subr.mxu0 0.0
        %266 = vmatpush2.msra.mxu0 0.0
        %267 = vmatprep.subr.mxu0 0.0
        %268 = vmatpush2.msra.mxu0 0.0
        %269 = vmatprep.subr.mxu0 0.0
        %270 = vmatpush2.msra.mxu0 0.0
        %271 = vmatprep.subr.mxu0 0.0
        %272 = vmatpush2.msra.mxu0 0.0
        %273 = vmatprep.subr.mxu0 0.0
        %274 = vmatpush2.msra.mxu0 0.0
        %275 = vmatprep.subr.mxu0 0.0
        %276 = vmatpush2.msra.mxu0 0.0
        %277 = vmatprep.subr.mxu0 0.0
        %278 = vmatpush2.msra.mxu0 0.0
        %279 = vmatprep.subr.mxu0 0.0
        %280 = vmatpush2.msra.mxu0 0.0
        %281 = vmatprep.subr.mxu0 0.0
        %282 = vmatpush2.msra.mxu0 0.0
        %283 = vmatprep.subr.mxu0 0.0
        %284 = vmatpush2.msra.mxu0 0.0
        %285 = vmatprep.subr.mxu0 0.0
        %286 = vmatpush2.msra.mxu0 0.0
        %287 = vmatprep.subr.mxu0 0.0
        %288 = vmatpush2.msra.mxu0 0.0
        %289 = vmatprep.subr.mxu0 0.0
        %290 = vmatpush2.msra.mxu0 0.0
        %291 = vmatprep.subr.mxu0 0.0
        %292 = vmatpush2.msra.mxu0 0.0
        %293 = vmatprep.subr.mxu0 0.0
        %294 = vmatpush2.msra.mxu0 0.0
        %295 = vmatprep.subr.mxu0 0.0
        %296 = vmatpush2.msra.mxu0 0.0
        %297 = vmatprep.mubr.f32.mxu0 0.0
        %298 = vmatmul.mubr.f32.gmra.mxu0 %v206
        %v299 = vpop.f32.mrf.mxu0
        %v300 = vadd.f32 %v231, %v299
        %v301 = vpop.f32.mrf.mxu0
        %302 = vmatprep.mubr.f32.mxu0 0.0
        %303 = vmatmul.mubr.f32.gmra.mxu0 %v207
        %v304 = vpop.f32.mrf.mxu0
        %v305 = vadd.f32 %v231, %v304
        %v306 = vpop.f32.mrf.mxu0
        %307 = vmatprep.mubr.f32.mxu0 0.0
        %308 = vmatmul.mubr.f32.gmra.mxu0 %v208
        %v309 = vpop.f32.mrf.mxu0
        %v310 = vadd.f32 %v231, %v309
        %v311 = vpop.f32.mrf.mxu0
        %312 = vmatprep.mubr.f32.mxu0 0.0
        %313 = vmatmul.mubr.f32.gmra.mxu0 %v209
        %v314 = vpop.f32.mrf.mxu0
        %v315 = vadd.f32 %v231, %v314
        %v316 = vpop.f32.mrf.mxu0
        %317 = vdwg.mxu0
        %vm318 = vcmp.ge.f32.partialorder %v300, 0.0
        %vm319 = vcmp.ge.f32.partialorder %v305, 0.0
        %vm320 = vcmp.ge.f32.partialorder %v310, 0.0
        %vm321 = vcmp.ge.f32.partialorder %v315, 0.0
        %v322 = vmul.f32 %v300, 0.01
        %v323 = vmul.f32 %v305, 0.01
        %v324 = vmul.f32 %v310, 0.01
        %v325 = vmul.f32 %v315, 0.01
        %v326 = vsel %vm318, %v300, %v322
        %v327 = vsel %vm319, %v305, %v323
        %v328 = vsel %vm320, %v310, %v324
        %v329 = vsel %vm321, %v315, %v325
        %330 = vst [vmem:[%s203] sm:$0xff] %v326
        %331 = vst [vmem:[%s203 + $0x8] sm:$0xff] %v327
        %332 = vst [vmem:[%s203 + $0x10] sm:$0xff] %v328
        %333 = vst [vmem:[%s203 + $0x18] sm:$0xff] %v329
        %s334 = sand.u32 %s97, 1
        %s335 = scalar_lea.sflag [#allocation4], %s334
        %s336 = sand.u32 %s97, 1
        %s337 = smul.addr %s336, 32
        %s338 = scalar_lea.vmem [#allocation7], %s337
        // Predicated region
        $region41: #{tpu_custom_call.1} parent=31 // pred_check
          %p339 = pneg %p107
        $region42: #{tpu_custom_call.1} parent=31 // pred_check_branch
          %341 = sbr.rel (%p339) target = $region44
        $region43: #{tpu_custom_call.1} parent=31 // pred_region
          %s342 = smul.u32 4, %s21
          %s344 = ssub.s32 512, 512
          %345 = vsyncadd %s335, %s344
          %s346 = smul.addr %s342, 128
          %s347 = scalar_lea.hbm %s3, %s346
          %s348 = sshll.u32 %s338, 4
          %s349 = int_to_ptr.vmem [resolvable:$true] %s348
          %354 = dma.vmem_to_hbm [thread:$0]  %s349, 512, %s347, %s335, 128, 128, 8
        $region44: #{tpu_custom_call.1} parent=31 // pred_fallthru
          _
      $region32: #{tpu_custom_call.1} parent=5 // pred_fallthru
        _
      %p355 = scmp.le.s32.totalorder 2, %s16
      // Predicated region
      $region45: #{tpu_custom_call.1} parent=5 // pred_check
        %p356 = pneg %p355
      $region46: #{tpu_custom_call.1} parent=5 // pred_check_branch
        %358 = sbr.rel (%p356) target = $region48
      $region47: #{tpu_custom_call.1} parent=5 // pred_region
        %s359 = ssub.s32 %s16, 2
        // Predicated region
        $region49: #{tpu_custom_call.1} parent=47 // pred_check
          %p360 = pneg %p113
        $region50: #{tpu_custom_call.1} parent=47 // pred_check_branch
          %362 = sbr.rel (%p360) target = $region52
        $region51: #{tpu_custom_call.1} parent=47 // pred_region
          %s363 = sand.u32 %s98, 1
          %s364 = scalar_lea.sflag [#allocation4], %s363
          %s365 = sand.u32 %s98, 1
          %s366 = smul.addr %s365, 32
          %s367 = scalar_lea.vmem [#allocation7], %s366
          %368 = dma.done %s364, 512
        $region52: #{tpu_custom_call.1} parent=47 // pred_fallthru
          _
      $region48: #{tpu_custom_call.1} parent=5 // pred_fallthru
        _
    $region6: #{tpu_custom_call.1} parent=1 // loop_footer
      %s20 = sadd.s32 1, %s16
    $region7: #{tpu_custom_call.1} parent=1 // loop_footer_branch
      %15 = sbr.rel target = $region3
    $region8: #{tpu_custom_call.1} parent=1 // loop_exit
      _
    %369 = vsyncpa [#allocation3], 1
    %s370 = scalar_lea.sflag [#allocation3], 1
    %371 = vsyncpa %s370, 1
    %372 = vsyncpa [#allocation6], 1
    %373 = vsyncpa [#allocation4], 1
    %s374 = scalar_lea.sflag [#allocation4], 1
    %375 = vsyncpa %s374, 1

</llo_original>
